<compile_context>
chip_gen: v7x
topology: tpu7x:2x2x1
jax: 0.10.0
libtpu: 0.0.40
codegen_flags: <defaults>
</compile_context>

<pallas_src>
from functools import partial

import jax
import jax.numpy as jnp
from jax.experimental import pallas as pl
from jax.experimental.pallas import tpu as pltpu

_LANE = 128
_SUBLANE = 8


def _tpu_generation():
    """Best-effort TPU generation (5, 6, 7, ...); 0 if unknown."""
    try:
        kind = jax.devices()[0].device_kind  # e.g. "TPU v5e", "TPU v6e", "TPU7x"
    except Exception:  # pragma: no cover - defensive
        return 0
    digits = ""
    for ch in str(kind):
        if ch.isdigit():
            digits += ch
        elif digits:
            break
    try:
        return int(digits)
    except ValueError:
        return 0


def _target_block_bytes(gen):
    # v7x: 3.2 TB/s -> a 2 MiB block streams in ~1.3 us, so the ~0.35 us fixed
    # per-step overhead is 20-25%; grow to 8 MiB.  v6e: 4 MiB is free on its
    # VMEM budget.  v5e (16 MiB scoped default, 0.82 TB/s): keep 2 MiB.
    if gen >= 7:
        return 8 * 1024 * 1024
    if gen == 6:
        return 4 * 1024 * 1024
    return 2 * 1024 * 1024


def _sublane_pack(dtype):
    """Rows per packed vreg sublane group: 8 (f32), 16 (bf16), 32 (int8/fp8)."""
    itemsize = jnp.dtype(dtype).itemsize
    return max(_SUBLANE, (4 // max(itemsize, 1)) * _SUBLANE)


def _elu_plus_one_kernel(x_ref, o_ref, *, compute_f32):
    x = x_ref[...]
    xc = x.astype(jnp.float32) if compute_f32 else x
    one = jnp.asarray(1.0, dtype=xc.dtype)
    zero = jnp.asarray(0.0, dtype=xc.dtype)
    # elu(x) + 1 == x + 1 (x > 0) ; exp(x) (x <= 0).
    # NOTE: jnp.where evaluates both branches, so exp(x) may overflow to +inf
    # for large positive x; the value is discarded by the select, which matches
    # the reference.  Do NOT rewrite into a form that turns this into a NaN.
    # The exp runs on the otherwise-idle EUP slot and is hidden under the
    # HBM-bound loads/stores.
    y = jnp.where(xc > zero, xc + one, jnp.exp(xc))
    o_ref[...] = y.astype(o_ref.dtype)


def _elu_plus_one_ref(x):
    xf = x.astype(jnp.float32)
    return jnp.where(xf > 0.0, xf + 1.0, jnp.exp(xf)).astype(x.dtype)


def _compute_in_f32(dtype, gen):
    # v6e/v7x have bf16 VPU + EUP: keep bf16 native (halves vld/vst traffic).
    # v5e (and unknown) upcasts to f32.
    return not (jnp.dtype(dtype) == jnp.dtype(jnp.bfloat16) and gen >= 6)


def _elu_plus_one_2d(x2d, donate=False):
    """Run the kernel on a lane-dense (R, C) slab (C a multiple of 128)."""
    R, C = x2d.shape
    dtype = x2d.dtype
    itemsize = jnp.dtype(dtype).itemsize
    gen = _tpu_generation()
    pack = _sublane_pack(dtype)
    target_bytes = _target_block_bytes(gen)

    rows_target = max(pack, (target_bytes // (C * itemsize)) // pack * pack)
    if R <= pack:
        br = R  # full-dim block (allowed even when R < pack)
    else:
        # Clamp so the grid has >= 2 steps: enables pipelining everywhere and
        # lets both v7x TensorCores stream via dimension_semantics="parallel".
        half = max(pack, ((R // 2) // pack) * pack)
        br = min(rows_target, half)
    grid = (pl.cdiv(R, br),)

    n = R * C
    cost = pl.CostEstimate(
        flops=n, transcendentals=n, bytes_accessed=2 * n * itemsize
    )

    cp_kwargs = dict(dimension_semantics=("parallel",))
    if gen >= 7:
        # 4 double-buffered 8 MiB blocks hit v7x's 32 MiB scoped default;
        # physical VMEM per TC is 64 MiB so 40 MiB leaves headroom.
        cp_kwargs["vmem_limit_bytes"] = 40 * 1024 * 1024

    kwargs = {}
    if donate:
        # Only saves HBM footprint (kernel still reads+writes the full tensor);
        # caller must no longer use x.
        kwargs["input_output_aliases"] = {0: 0}

    return pl.pallas_call(
        partial(_elu_plus_one_kernel, compute_f32=_compute_in_f32(dtype, gen)),
        out_shape=jax.ShapeDtypeStruct((R, C), dtype),
        grid_spec=pltpu.PrefetchScalarGridSpec(
            num_scalar_prefetch=0,
            grid=grid,
            in_specs=[pl.BlockSpec((br, C), lambda i: (i, 0))],
            out_specs=pl.BlockSpec((br, C), lambda i: (i, 0)),
        ),
        compiler_params=pltpu.CompilerParams(**cp_kwargs),
        cost_estimate=cost,
        **kwargs,
    )(x2d)


def _elu_plus_one_ragged(x_flat, donate=False):
    """Fallback for element counts not divisible by 128: a single pallas_call
    over a (1, T) view with a lane-blocked cdiv grid (boundary block masked by
    Pallas).  No slice / jnp tail / concatenate round trip."""
    T = x_flat.shape[0]
    dtype = x_flat.dtype
    itemsize = jnp.dtype(dtype).itemsize
    gen = _tpu_generation()

    # Single-sublane layout => VMEM footprint is ~8x the logical data, so keep
    # blocks modest: 256 KiB of data -> ~2 MiB VMEM per buffer, ~8 MiB total.
    max_bc = max(_LANE, ((256 * 1024) // itemsize) // _LANE * _LANE)
    if T <= max_bc:
        bc = T  # full-dim block (legal for any T, single step)
    else:
        bc = max_bc  # multiple of 128; boundary block masked by Pallas
    grid = (pl.cdiv(T, bc),)

    cost = pl.CostEstimate(
        flops=T, transcendentals=T, bytes_accessed=2 * T * itemsize
    )
    kwargs = {}
    if donate:
        kwargs["input_output_aliases"] = {0: 0}

    y = pl.pallas_call(
        partial(_elu_plus_one_kernel, compute_f32=_compute_in_f32(dtype, gen)),
        out_shape=jax.ShapeDtypeStruct((1, T), dtype),
        grid_spec=pltpu.PrefetchScalarGridSpec(
            num_scalar_prefetch=0,
            grid=grid,
            in_specs=[pl.BlockSpec((1, bc), lambda i: (0, i))],
            out_specs=pl.BlockSpec((1, bc), lambda i: (0, i)),
        ),
        compiler_params=pltpu.CompilerParams(
            dimension_semantics=("parallel",),
        ),
        cost_estimate=cost,
        **kwargs,
    )(x_flat.reshape(1, T))
    return y.reshape(T)


def _choose_width(T, pack):
    """Widest lane-dense width C (multiple of 128) dividing T, preferring
    factorizations with fully-packed vregs (R >= pack) and >= 2 grid steps
    (R >= 2*pack)."""
    best = None          # widest divisible C
    best_packed = None   # widest divisible C with R >= pack
    best_multi = None    # widest divisible C with R >= 2*pack
    for c in (4096, 2048, 1024, 512, 256, 128):
        if T % c:
            continue
        r = T // c
        if best is None:
            best = c
        if best_packed is None and r >= pack:
            best_packed = c
        if best_multi is None and r >= 2 * pack:
            best_multi = c
    return best_multi or best_packed or best


def _elu_plus_one_flat(x_flat, donate=False):
    """elu(x)+1 over a flat array: lane-dense tiling, no padding/concat copies."""
    T = x_flat.shape[0]
    if T == 0:
        return x_flat
    C = _choose_width(T, _sublane_pack(x_flat.dtype))
    if C is None:
        return _elu_plus_one_ragged(x_flat, donate=donate)
    return _elu_plus_one_2d(
        x_flat.reshape(T // C, C), donate=donate
    ).reshape(T)


class FeatureMap:
    """JAX/Pallas port of the fast_transformers FeatureMap interface with the
    canonical elu(x)+1 forward implemented as a TPU kernel."""

    def __init__(self, query_dims):
        self.query_dims = query_dims

    def new_feature_map(self, device=None):
        # TODO(synk): deterministic, parameter-free feature map -> nothing to resample.
        return None

    def forward_queries(self, x):
        return self(x)

    def forward_keys(self, x):
        return self(x)

    def forward(self, x, donate=False):
        assert x.shape[-1] == self.query_dims, "last dim must equal query_dims"
        orig_shape = x.shape
        total = 1
        for d in orig_shape:
            total *= d
        y_flat = _elu_plus_one_flat(x.reshape(total), donate=donate)
        return y_flat.reshape(orig_shape)

    def __call__(self, x):
        return self.forward(x)

    @classmethod
    def factory(cls, *args, **kwargs):
        def inner(query_dims):
            return cls(query_dims, *args, **kwargs)

        return inner


if __name__ == "__main__":
    key = jax.random.PRNGKey(0)
    # (batch=2, seq=8, heads=4, query_dims=32)
    N, L, H, E = 2, 8, 4, 32
    x = jax.random.normal(key, (N, L, H, E), dtype=jnp.float32)

    fmap = FeatureMap(query_dims=E)
    fmap.new_feature_map()

    q_feat = fmap.forward_queries(x)
    k_feat = fmap.forward_keys(x)
    jax.block_until_ready(q_feat)
    jax.block_until_ready(k_feat)

    ref = _elu_plus_one_ref(x)
    assert q_feat.shape == x.shape and q_feat.dtype == x.dtype
    assert jnp.allclose(q_feat, ref, atol=1e-5, rtol=1e-5)
    assert jnp.allclose(k_feat, ref, atol=1e-5, rtol=1e-5)

    # bf16 path (native bf16 compute on v6e/v7x, f32 upcast on v5e).
    x_bf16 = x.astype(jnp.bfloat16)
    y_bf16 = FeatureMap(query_dims=E)(x_bf16)
    jax.block_until_ready(y_bf16)
    assert y_bf16.dtype == jnp.bfloat16
    assert jnp.allclose(
        y_bf16.astype(jnp.float32),
        _elu_plus_one_ref(x_bf16).astype(jnp.float32),
        atol=6e-2, rtol=6e-2,
    )

    # Non-128-divisible path: single pallas_call on a (1, T) view, no concat.
    x2 = jax.random.normal(jax.random.PRNGKey(1), (2, 7, 4, 33), dtype=jnp.float32)
    y2 = FeatureMap(query_dims=33)(x2)
    jax.block_until_ready(y2)
    assert jnp.allclose(y2, _elu_plus_one_ref(x2), atol=1e-5, rtol=1e-5)

    print("KERNEL_OK")
</pallas_src>

<mosaic_0001>
module attributes {stable_mosaic.version = 11 : i64} {
  func.func @_elu_plus_one_kernel(%arg0: i32, %arg1: memref<8x128xf32, #tpu.memory_space<vmem>>, %arg2: memref<8x128xf32, #tpu.memory_space<vmem>>) attributes {dimension_semantics = [#tpu.dimension_semantics<parallel>], iteration_bounds = array<i64: 2>, scalar_prefetch = 0 : i64, scratch_operands = 0 : i64, tpu.core_type = #tpu.core_type<tc>, window_params = [{transform_indices = @transform_0, window_bounds = array<i64: 8, 128>}, {transform_indices = @transform_1, window_bounds = array<i64: 8, 128>}]} {
    %c0 = arith.constant 0 : index
    %c0_0 = arith.constant 0 : index
    %0 = vector.load %arg1[%c0, %c0_0] : memref<8x128xf32, #tpu.memory_space<vmem>>, vector<8x128xf32>
    %cst = arith.constant 0.000000e+00 : f32
    %1 = vector.broadcast %cst : f32 to vector<8x128xf32>
    %2 = arith.cmpf ogt, %0, %1 : vector<8x128xf32>
    %cst_1 = arith.constant 1.000000e+00 : f32
    %3 = vector.broadcast %cst_1 : f32 to vector<8x128xf32>
    %4 = arith.addf %0, %3 : vector<8x128xf32>
    %5 = math.exp %0 : vector<8x128xf32>
    %6 = arith.select %2, %4, %5 : vector<8x128xi1>, vector<8x128xf32>
    %c0_2 = arith.constant 0 : index
    %c0_3 = arith.constant 0 : index
    %7 = vector.load %arg2[%c0_2, %c0_3] : memref<8x128xf32, #tpu.memory_space<vmem>>, vector<8x128xf32>
    tpu.vector_store %arg2[%c0_2, %c0_3], %6 {strides = array<i32>} : memref<8x128xf32, #tpu.memory_space<vmem>>, vector<8x128xf32>,
    return
  }
  func.func @transform_0(%arg0: i32) -> (i32, i32) {
    %c0_i32 = arith.constant 0 : i32
    %c0_i32_0 = arith.constant 0 : i32
    return %arg0, %c0_i32 : i32, i32
  }
  func.func @transform_1(%arg0: i32) -> (i32, i32) {
    %c0_i32 = arith.constant 0 : i32
    %c0_i32_0 = arith.constant 0 : i32
    return %arg0, %c0_i32 : i32, i32
  }
}

</mosaic_0001>

<llo_original>
// kernel: tpu_custom_call.1
$region0: #{tpu_custom_call.1}
  #allocation0 [shape = 'u32[]', space=smem, size = 0x4, offset = 0x4, fixed_abs, tag = 'smem constant byte address 0x4 - core index']
  #allocation1 [shape = 'u32[144,128]{1,0:T(1,128)}', space=vmem, size = 0x12000, scoped, tag = 'internal scratch']
  %s0 = inlined_call_operand.hbm [shape: f32[16,128], index: 0, kind: input, shape index: {}]
  %s1 = inlined_call_operand.hbm [shape: f32[16,128], index: 1, kind: output, shape index: {}]
  %s2 = sld [smem:[#allocation0]]
  $region41: #{tpu_custom_call.1} parent=0
    _
  %s4 = ssub.s32 1, %s2
  %s5 = scalar_select 0, %s4, %s2
  $region1: #{tpu_custom_call.1} parent=0
    #allocation2 [shape = 'u8[8192]{0}', space=vmem, size = 0x2000, scoped, tag = 'input window, operand 0']
    #allocation3 [shape = 's32[2]{0}', space=sflag, size = 0x8, scoped, tag = 'scoped memory for tpu_custom_call.1']
    #allocation4 [shape = 's32[2]{0}', space=sflag, size = 0x8, scoped, tag = 'scoped memory for tpu_custom_call.1']
    #allocation5 [shape = 'u8[8192]{0}', space=vmem, size = 0x2000, scoped, tag = 'output window, operand 0']
    %6 = vsyncpa [#allocation3], 0
    %s7 = scalar_lea.sflag [#allocation3], 1
    %8 = vsyncpa %s7, 0
    %9 = vsyncpa [#allocation4], 0
    %s10 = scalar_lea.sflag [#allocation4], 1
    %11 = vsyncpa %s10, 0
    loop: start=0, step=1, limit=4
    $region2: #{tpu_custom_call.1} parent=1 // loop_pre_header
      _
    $region3: #{tpu_custom_call.1} parent=1 // loop_header
      %s13 = sphi 0, %s17
      %p14 = scmp.ge.s32.totalorder %s13, 4
      %s23 = sphi 0, %s25
      %s26 = sphi 0, %s23
      %s27 = sphi 0, %s26
      %s43 = sphi 0, %s27
      %s49 = sphi 0, %s51
      %s52 = sphi 0, %s49
      %s53 = sphi 0, %s52
      %s69 = sphi 0, %s53
    $region4: #{tpu_custom_call.1} parent=1 // loop_header_branch
      %16 = sbr.rel (%p14) target = $region8
    $region5: #{tpu_custom_call.1} parent=1 // loop_body
      %s18 = ssub.s32 %s13, 1
      %s19 = ssub.s32 %s13, 2
      %s20 = sadd.s32 %s13, 1
      %s21 = ssub.s32 %s13, %s20
      %p22 = scmp.eq.s32.totalorder %s21, 0
      %s24 = sadd.s32 %s23, 1
      %s25 = scalar_select %p22, %s23, %s24
      %p28 = pneg %p22
      %p29 = scmp.eq.s32.totalorder %s13, 1
      %p30 = por %p28, %p29
      %p31 = scmp.ne.s32.totalorder %s23, %s26
      %p32 = scmp.eq.s32.totalorder %s13, 0
      %p33 = por %p31, %p32
      %p34 = scmp.ne.s32.totalorder %s23, %s26
      %p35 = scmp.eq.s32.totalorder %s18, 1
      %p36 = por %p34, %p35
      %p37 = scmp.ne.s32.totalorder %s26, %s27
      %p38 = scmp.eq.s32.totalorder %s18, 0
      %p39 = por %p37, %p38
      %p40 = scmp.ne.s32.totalorder %s26, %s27
      %p41 = scmp.eq.s32.totalorder %s19, 1
      %p42 = por %p40, %p41
      %p44 = scmp.ne.s32.totalorder %s27, %s43
      %p45 = scmp.eq.s32.totalorder %s19, 0
      %p46 = por %p44, %p45
      %s47 = ssub.s32 %s13, %s20
      %p48 = scmp.eq.s32.totalorder %s47, 0
      %s50 = sadd.s32 %s49, 1
      %s51 = scalar_select %p48, %s49, %s50
      %p54 = pneg %p48
      %p55 = scmp.eq.s32.totalorder %s13, 1
      %p56 = por %p54, %p55
      %p57 = scmp.ne.s32.totalorder %s49, %s52
      %p58 = scmp.eq.s32.totalorder %s13, 0
      %p59 = por %p57, %p58
      %p60 = scmp.ne.s32.totalorder %s49, %s52
      %p61 = scmp.eq.s32.totalorder %s18, 1
      %p62 = por %p60, %p61
      %p63 = scmp.ne.s32.totalorder %s52, %s53
      %p64 = scmp.eq.s32.totalorder %s18, 0
      %p65 = por %p63, %p64
      %p66 = scmp.ne.s32.totalorder %s52, %s53
      %p67 = scmp.eq.s32.totalorder %s19, 1
      %p68 = por %p66, %p67
      %p70 = scmp.ne.s32.totalorder %s53, %s69
      %p71 = scmp.eq.s32.totalorder %s19, 0
      %p72 = por %p70, %p71
      %p73 = scmp.le.s32.totalorder 1, %s13
      %p74 = scmp.lt.s32.totalorder %s13, 3
      %p75 = pnand %p73, %p74
      %p76 = pneg %p75
      // Predicated region
      $region9: #{tpu_custom_call.1} parent=5 // pred_check
        _
      $region10: #{tpu_custom_call.1} parent=5 // pred_check_branch
        %78 = sbr.rel (%p75) target = $region12
      $region11: #{tpu_custom_call.1} parent=5 // pred_region
        %s79 = ssub.s32 %s13, 1
      $region12: #{tpu_custom_call.1} parent=5 // pred_fallthru
        _
      %p80 = scmp.lt.s32.totalorder %s13, 2
      // Predicated region
      $region13: #{tpu_custom_call.1} parent=5 // pred_check
        %p81 = pneg %p80
      $region14: #{tpu_custom_call.1} parent=5 // pred_check_branch
        %83 = sbr.rel (%p81) target = $region16
      $region15: #{tpu_custom_call.1} parent=5 // pred_region
        // Predicated region
        $region17: #{tpu_custom_call.1} parent=15 // pred_check
          %p84 = pneg %p33
        $region18: #{tpu_custom_call.1} parent=15 // pred_check_branch
          %86 = sbr.rel (%p84) target = $region20
        $region19: #{tpu_custom_call.1} parent=15 // pred_region
          %s87 = sand.u32 %s23, 1
          %s88 = scalar_lea.sflag [#allocation3], %s87
          %s89 = sand.u32 %s23, 1
          %s90 = smul.addr %s89, 8
          %s91 = scalar_lea.vmem [#allocation2], %s90
          %s93 = ssub.s32 128, 128
          %94 = vsyncadd %s88, %s93
          %s95 = smul.addr %s13, 128
          %s96 = scalar_lea.hbm %s0, %s95
          %s98 = sshll.u32 %s91, 4
          %s99 = int_to_ptr.vmem [resolvable:$true] %s98
          %101 = dma.hbm_to_vmem [thread:$0]  %s96, 128, %s99, %s88
        $region20: #{tpu_custom_call.1} parent=15 // pred_fallthru
          _
      $region16: #{tpu_custom_call.1} parent=5 // pred_fallthru
        _
      %p102 = scmp.le.s32.totalorder 1, %s13
      %p103 = scmp.lt.s32.totalorder %s13, 3
      %p104 = pnand %p102, %p103
      %p105 = pneg %p104
      // Predicated region
      $region21: #{tpu_custom_call.1} parent=5 // pred_check
        _
      $region22: #{tpu_custom_call.1} parent=5 // pred_check_branch
        %107 = sbr.rel (%p104) target = $region24
      $region23: #{tpu_custom_call.1} parent=5 // pred_region
        %s108 = ssub.s32 %s13, 1
        %s109 = sand.u32 %s26, 1
        %s110 = scalar_lea.sflag [#allocation3], %s109
        %s111 = sand.u32 %s26, 1
        %s112 = smul.addr %s111, 8
        %s113 = scalar_lea.vmem [#allocation2], %s112
        // Predicated region
        $region25: #{tpu_custom_call.1} parent=23 // pred_check
          %p114 = pneg %p39
        $region26: #{tpu_custom_call.1} parent=23 // pred_check_branch
          %116 = sbr.rel (%p114) target = $region28
        $region27: #{tpu_custom_call.1} parent=23 // pred_region
          %117 = dma.done %s110, 128
        $region28: #{tpu_custom_call.1} parent=23 // pred_fallthru
          _
        %s118 = sand.u32 %s26, 1
        %s119 = scalar_lea.sflag [#allocation3], %s118
        %s120 = sand.u32 %s26, 1
        %s121 = smul.addr %s120, 8
        %s122 = scalar_lea.vmem [#allocation2], %s121
        %p123 = pneg %p39
        %p124 = pneg %p36
        %p125 = pneg %p65
        %p126 = pneg %p62
        %s127 = sand.u32 %s52, 1
        %s128 = scalar_lea.sflag [#allocation4], %s127
        %s129 = sand.u32 %s52, 1
        %s130 = smul.addr %s129, 8
        %s131 = scalar_lea.vmem [#allocation5], %s130
        %v132 = vld [vmem:[%s113] sm:$0xff]
        %vm133 = vcmp.gt.f32.partialorder %v132, 0.0
        %v134 = vadd.f32 %v132, 1.0
        %v135 = vmul.f32 %v132, 1.442695
        %v136 = vpow.pop %v135
        %v137 = vsel %vm133, %v134, %v136
        %138 = vst [vmem:[%s131] sm:$0xff] %v137
        %s139 = sand.u32 %s52, 1
        %s140 = scalar_lea.sflag [#allocation4], %s139
        %s141 = sand.u32 %s52, 1
        %s142 = smul.addr %s141, 8
        %s143 = scalar_lea.vmem [#allocation5], %s142
        // Predicated region
        $region29: #{tpu_custom_call.1} parent=23 // pred_check
          %p144 = pneg %p62
        $region30: #{tpu_custom_call.1} parent=23 // pred_check_branch
          %146 = sbr.rel (%p144) target = $region32
        $region31: #{tpu_custom_call.1} parent=23 // pred_region
          %s148 = ssub.s32 128, 128
          %149 = vsyncadd %s140, %s148
          %s150 = smul.addr %s18, 128
          %s151 = scalar_lea.hbm %s1, %s150
          %s153 = sshll.u32 %s143, 4
          %s154 = int_to_ptr.vmem [resolvable:$true] %s153
          %156 = dma.vmem_to_hbm [thread:$0]  %s154, 128, %s151, %s140
        $region32: #{tpu_custom_call.1} parent=23 // pred_fallthru
          _
      $region24: #{tpu_custom_call.1} parent=5 // pred_fallthru
        _
      %p157 = scmp.le.s32.totalorder 2, %s13
      // Predicated region
      $region33: #{tpu_custom_call.1} parent=5 // pred_check
        %p158 = pneg %p157
      $region34: #{tpu_custom_call.1} parent=5 // pred_check_branch
        %160 = sbr.rel (%p158) target = $region36
      $region35: #{tpu_custom_call.1} parent=5 // pred_region
        %s161 = ssub.s32 %s13, 2
        // Predicated region
        $region37: #{tpu_custom_call.1} parent=35 // pred_check
          %p162 = pneg %p68
        $region38: #{tpu_custom_call.1} parent=35 // pred_check_branch
          %164 = sbr.rel (%p162) target = $region40
        $region39: #{tpu_custom_call.1} parent=35 // pred_region
          %s165 = sand.u32 %s53, 1
          %s166 = scalar_lea.sflag [#allocation4], %s165
          %s167 = sand.u32 %s53, 1
          %s168 = smul.addr %s167, 8
          %s169 = scalar_lea.vmem [#allocation5], %s168
          %170 = dma.done %s166, 128
        $region40: #{tpu_custom_call.1} parent=35 // pred_fallthru
          _
      $region36: #{tpu_custom_call.1} parent=5 // pred_fallthru
        _
    $region6: #{tpu_custom_call.1} parent=1 // loop_footer
      %s17 = sadd.s32 1, %s13
    $region7: #{tpu_custom_call.1} parent=1 // loop_footer_branch
      %12 = sbr.rel target = $region3
    $region8: #{tpu_custom_call.1} parent=1 // loop_exit
      _
    %171 = vsyncpa [#allocation3], 1
    %s172 = scalar_lea.sflag [#allocation3], 1
    %173 = vsyncpa %s172, 1
    %174 = vsyncpa [#allocation4], 1
    %s175 = scalar_lea.sflag [#allocation4], 1
    %176 = vsyncpa %s175, 1

</llo_original>
